<compile_context>
chip_gen: v7x
topology: tpu7x:2x2x1
jax: 0.10.0
libtpu: 0.0.40
codegen_flags: <defaults>
</compile_context>

<pallas_src>
import jax
import jax.numpy as jnp
from jax.experimental import pallas as pl
from jax.experimental.pallas import tpu as pltpu


def _round_up(x, m):
    return ((x + m - 1) // m) * m


def classifier_kernel(x_ref, mean_ref, invstd_ref,
                      w1_ref, b1_ref, w2_ref, b2_ref, w3_ref, b3_ref,
                      o_ref):
    # ---- BatchNorm1d(affine=False) with precomputed full-batch statistics ----
    x = x_ref[...].astype(jnp.float32)                       # [TB, F_pad]
    xn = (x - mean_ref[...]) * invstd_ref[...]               # [TB, F_pad] (f32)

    # ---- fc1 + ReLU (bf16 MXU operands, f32 accumulate) ----
    h1 = jnp.dot(xn.astype(jnp.bfloat16), w1_ref[...],
                 preferred_element_type=jnp.float32)
    h1 = jnp.maximum(h1 + b1_ref[...], 0.0)                  # [TB, 256]

    # ---- fc2 + ReLU ----
    h2 = jnp.dot(h1.astype(jnp.bfloat16), w2_ref[...],
                 preferred_element_type=jnp.float32)
    h2 = jnp.maximum(h2 + b2_ref[...], 0.0)                  # [TB, 128]

    # ---- fc3 + ReLU (output lane-padded to 128) ----
    h3 = jnp.dot(h2.astype(jnp.bfloat16), w3_ref[...],
                 preferred_element_type=jnp.float32)
    h3 = jnp.maximum(h3 + b3_ref[...], 0.0)                  # [TB, 128]

    o_ref[...] = h3.astype(o_ref.dtype)


def classifier_forward_plain(x, params, *, tb=None):
    """x: [B, F] float; params from init_params. Returns [B, 50] float32."""
    B, F = x.shape
    xf = x.astype(jnp.float32)

    # Full-batch BatchNorm stats (training mode, biased variance), hoisted out
    # of the kernel so batch tiling does not alter the numerics.
    mean = jnp.mean(xf, axis=0, keepdims=True)                # [1, F]
    var = jnp.mean((xf - mean) ** 2, axis=0, keepdims=True)   # biased
    inv_std = jax.lax.rsqrt(var + 1e-5)

    OUT, OUT_PAD = 50, 128
    H1, H2 = 256, 128
    F_pad = _round_up(F, 128)

    # Batch tile: fill the MXU M dim on realistic batches; VMEM per x tile is
    # tb * F_pad * 4 bytes * 2 buffers -> stays far under v7x's 64 MiB for
    # tb<=512 and F_pad<=4096, so no vmem_limit override is needed.
    if tb is None:
        tb = 512 if B >= 512 else _round_up(B, 8)
    tb = max(8, _round_up(tb, 8))
    B_pad = _round_up(B, tb)
    n_tiles = B_pad // tb

    # Lane/sublane padding (zero rows/cols contribute exactly zero downstream).
    x_p = jnp.pad(xf, ((0, B_pad - B), (0, F_pad - F)))
    mean_p = jnp.pad(mean, ((0, 0), (0, F_pad - F)))
    inv_p = jnp.pad(inv_std, ((0, 0), (0, F_pad - F)))

    w1 = jnp.pad(params["w1t"], ((0, F_pad - F), (0, 0)))         # [F_pad, 256] bf16
    b1 = params["b1"]                                             # [1, 256] f32
    w2 = params["w2t"]                                            # [256, 128] bf16
    b2 = params["b2"]                                             # [1, 128] f32
    w3 = jnp.pad(params["w3t"], ((0, 0), (0, OUT_PAD - OUT)))     # [128, 128] bf16
    b3 = jnp.pad(params["b3"], ((0, 0), (0, OUT_PAD - OUT)))      # [1, 128] f32

    flops = 2 * B_pad * (F_pad * H1 + H1 * H2 + H2 * OUT_PAD)
    bytes_accessed = (x_p.size * 4
                      + (w1.size + w2.size + w3.size) * 2
                      + (b1.size + b2.size + b3.size + mean_p.size + inv_p.size) * 4
                      + B_pad * OUT_PAD * 4)

    grid_spec = pltpu.PrefetchScalarGridSpec(
        num_scalar_prefetch=0,
        grid=(n_tiles,),
        in_specs=[
            pl.BlockSpec((tb, F_pad), lambda i: (i, 0)),      # x tile
            pl.BlockSpec((1, F_pad), lambda i: (0, 0)),       # mean   (resident)
            pl.BlockSpec((1, F_pad), lambda i: (0, 0)),       # 1/std  (resident)
            pl.BlockSpec((F_pad, H1), lambda i: (0, 0)),      # w1     (resident)
            pl.BlockSpec((1, H1), lambda i: (0, 0)),          # b1
            pl.BlockSpec((H1, H2), lambda i: (0, 0)),         # w2
            pl.BlockSpec((1, H2), lambda i: (0, 0)),          # b2
            pl.BlockSpec((H2, OUT_PAD), lambda i: (0, 0)),    # w3 (lane-padded)
            pl.BlockSpec((1, OUT_PAD), lambda i: (0, 0)),     # b3 (lane-padded)
        ],
        out_specs=pl.BlockSpec((tb, OUT_PAD), lambda i: (i, 0)),
    )

    out_p = pl.pallas_call(
        classifier_kernel,
        out_shape=jax.ShapeDtypeStruct((B_pad, OUT_PAD), jnp.float32),
        grid_spec=grid_spec,
        compiler_params=pltpu.CompilerParams(
            dimension_semantics=("parallel",)),
        cost_estimate=pl.CostEstimate(
            flops=flops, transcendentals=0, bytes_accessed=bytes_accessed),
    )(x_p, mean_p, inv_p, w1, b1, w2, b2, w3, b3)

    return out_p[:B, :OUT]


def init_params(key, input_shape):
    """Synthetic parameters, PyTorch Linear init, pre-transposed to [in, out].
    Weights stored in bf16 (MXU operands), biases in f32."""
    ks = jax.random.split(key, 6)

    def linear(kw, kb, fan_in, fan_out):
        bound = 1.0 / jnp.sqrt(float(fan_in))
        w = jax.random.uniform(kw, (fan_out, fan_in), jnp.float32, -bound, bound)
        b = jax.random.uniform(kb, (fan_out,), jnp.float32, -bound, bound)
        return w.T.astype(jnp.bfloat16), b.reshape(1, fan_out)

    w1t, b1 = linear(ks[0], ks[1], input_shape, 256)
    w2t, b2 = linear(ks[2], ks[3], 256, 128)
    w3t, b3 = linear(ks[4], ks[5], 128, 50)
    return {"w1t": w1t, "b1": b1, "w2t": w2t, "b2": b2, "w3t": w3t, "b3": b3}


def reference_forward_plain(x, params):
    """Pure-JAX reference mirroring the kernel's math (bf16 MXU operands,
    f32 accumulation, full-batch training-mode BatchNorm stats)."""
    xf = x.astype(jnp.float32)
    mean = jnp.mean(xf, axis=0, keepdims=True)
    var = jnp.mean((xf - mean) ** 2, axis=0, keepdims=True)
    xn = (xf - mean) * jax.lax.rsqrt(var + 1e-5)

    def lin_relu(h, w_bf16, b):
        y = jnp.dot(h.astype(jnp.bfloat16), w_bf16,
                    preferred_element_type=jnp.float32) + b
        return jnp.maximum(y, 0.0)

    h1 = lin_relu(xn, params["w1t"], params["b1"])
    h2 = lin_relu(h1, params["w2t"], params["b2"])
    h3 = lin_relu(h2, params["w3t"], params["b3"])
    return h3


if __name__ == "__main__":
    key = jax.random.PRNGKey(0)
    k_x, k_p, k_x2 = jax.random.split(key, 3)

    # Small synthetic shapes: batch=8, features=32.
    B, INPUT_SHAPE = 8, 32
    x = jax.random.normal(k_x, (B, INPUT_SHAPE), jnp.float32)
    params = init_params(k_p, INPUT_SHAPE)

    fwd = jax.jit(classifier_forward_plain)
    out = jax.block_until_ready(fwd(x, params))
    ref = reference_forward_plain(x, params)
    assert out.shape == (B, 50)
    assert jnp.allclose(out, ref, atol=2e-3, rtol=2e-3)

    # Exercise the multi-tile grid + non-multiple-of-128 feature padding path.
    B2, F2 = 20, 40
    x2 = jax.random.normal(k_x2, (B2, F2), jnp.float32)
    params2 = init_params(k_p, F2)
    out2 = jax.block_until_ready(classifier_forward_plain(x2, params2, tb=8))
    ref2 = reference_forward_plain(x2, params2)
    assert out2.shape == (B2, 50)
    assert jnp.allclose(out2, ref2, atol=2e-3, rtol=2e-3)

    # TODO(synk): 'dropout' forward would need pltpu.prng_seed/prng_random_bits
    # masking, and 'mini' forward uses fc1m; only the default 'plain' path is
    # implemented here.
    print("KERNEL_OK")
</pallas_src>

<mosaic_0001>
module attributes {stable_mosaic.version = 11 : i64} {
  func.func @classifier_kernel(%arg0: i32, %arg1: memref<8x128xf32, #tpu.memory_space<vmem>>, %arg2: memref<1x128xf32, #tpu.memory_space<vmem>>, %arg3: memref<1x128xf32, #tpu.memory_space<vmem>>, %arg4: memref<128x256xbf16, #tpu.memory_space<vmem>>, %arg5: memref<1x256xf32, #tpu.memory_space<vmem>>, %arg6: memref<256x128xbf16, #tpu.memory_space<vmem>>, %arg7: memref<1x128xf32, #tpu.memory_space<vmem>>, %arg8: memref<128x128xbf16, #tpu.memory_space<vmem>>, %arg9: memref<1x128xf32, #tpu.memory_space<vmem>>, %arg10: memref<8x128xf32, #tpu.memory_space<vmem>>) attributes {dimension_semantics = [#tpu.dimension_semantics<parallel>], iteration_bounds = array<i64: 1>, scalar_prefetch = 0 : i64, scratch_operands = 0 : i64, tpu.core_type = #tpu.core_type<tc>, window_params = [{transform_indices = @transform_0, window_bounds = array<i64: 8, 128>}, {pipeline_mode = #tpu.pipeline_mode<synchronous>, transform_indices = @transform_1, window_bounds = array<i64: 1, 128>}, {pipeline_mode = #tpu.pipeline_mode<synchronous>, transform_indices = @transform_2, window_bounds = array<i64: 1, 128>}, {pipeline_mode = #tpu.pipeline_mode<synchronous>, transform_indices = @transform_3, window_bounds = array<i64: 128, 256>}, {pipeline_mode = #tpu.pipeline_mode<synchronous>, transform_indices = @transform_4, window_bounds = array<i64: 1, 256>}, {pipeline_mode = #tpu.pipeline_mode<synchronous>, transform_indices = @transform_5, window_bounds = array<i64: 256, 128>}, {pipeline_mode = #tpu.pipeline_mode<synchronous>, transform_indices = @transform_6, window_bounds = array<i64: 1, 128>}, {pipeline_mode = #tpu.pipeline_mode<synchronous>, transform_indices = @transform_7, window_bounds = array<i64: 128, 128>}, {pipeline_mode = #tpu.pipeline_mode<synchronous>, transform_indices = @transform_8, window_bounds = array<i64: 1, 128>}, {transform_indices = @transform_9, window_bounds = array<i64: 8, 128>}]} {
    %c0 = arith.constant 0 : index
    %c0_0 = arith.constant 0 : index
    %0 = vector.load %arg1[%c0, %c0_0] : memref<8x128xf32, #tpu.memory_space<vmem>>, vector<8x128xf32>
    %c0_1 = arith.constant 0 : index
    %c0_2 = arith.constant 0 : index
    %1 = vector.load %arg2[%c0_1, %c0_2] : memref<1x128xf32, #tpu.memory_space<vmem>>, vector<1x128xf32>
    %2 = vector.broadcast %1 : vector<1x128xf32> to vector<8x128xf32>
    %3 = arith.subf %0, %2 : vector<8x128xf32>
    %c0_3 = arith.constant 0 : index
    %c0_4 = arith.constant 0 : index
    %4 = vector.load %arg3[%c0_3, %c0_4] : memref<1x128xf32, #tpu.memory_space<vmem>>, vector<1x128xf32>
    %5 = vector.broadcast %4 : vector<1x128xf32> to vector<8x128xf32>
    %6 = arith.mulf %3, %5 : vector<8x128xf32>
    %7 = arith.truncf %6 : vector<8x128xf32> to vector<8x128xbf16>
    %c0_5 = arith.constant 0 : index
    %c0_6 = arith.constant 0 : index
    %8 = vector.load %arg4[%c0_5, %c0_6] : memref<128x256xbf16, #tpu.memory_space<vmem>>, vector<128x256xbf16>
    %cst = arith.constant dense<0.000000e+00> : vector<8x256xf32>
    %9 = tpu.matmul %7, %8, %cst {dimension_numbers = #tpu.dot_dimension_numbers<[1], [0], [0], [1], [0, 0, 1, 1], [], []>} : vector<8x128xbf16>, vector<128x256xbf16>, vector<8x256xf32> -> vector<8x256xf32>
    %c0_7 = arith.constant 0 : index
    %c0_8 = arith.constant 0 : index
    %10 = vector.load %arg5[%c0_7, %c0_8] : memref<1x256xf32, #tpu.memory_space<vmem>>, vector<1x256xf32>
    %11 = vector.broadcast %10 : vector<1x256xf32> to vector<8x256xf32>
    %12 = arith.addf %9, %11 : vector<8x256xf32>
    %cst_9 = arith.constant 0.000000e+00 : f32
    %13 = vector.broadcast %cst_9 : f32 to vector<8x256xf32>
    %14 = arith.maximumf %12, %13 : vector<8x256xf32>
    %15 = arith.truncf %14 : vector<8x256xf32> to vector<8x256xbf16>
    %c0_10 = arith.constant 0 : index
    %c0_11 = arith.constant 0 : index
    %16 = vector.load %arg6[%c0_10, %c0_11] : memref<256x128xbf16, #tpu.memory_space<vmem>>, vector<256x128xbf16>
    %cst_12 = arith.constant dense<0.000000e+00> : vector<8x128xf32>
    %17 = tpu.matmul %15, %16, %cst_12 {dimension_numbers = #tpu.dot_dimension_numbers<[1], [0], [0], [1], [0, 0, 1, 1], [], []>} : vector<8x256xbf16>, vector<256x128xbf16>, vector<8x128xf32> -> vector<8x128xf32>
    %c0_13 = arith.constant 0 : index
    %c0_14 = arith.constant 0 : index
    %18 = vector.load %arg7[%c0_13, %c0_14] : memref<1x128xf32, #tpu.memory_space<vmem>>, vector<1x128xf32>
    %19 = vector.broadcast %18 : vector<1x128xf32> to vector<8x128xf32>
    %20 = arith.addf %17, %19 : vector<8x128xf32>
    %cst_15 = arith.constant 0.000000e+00 : f32
    %21 = vector.broadcast %cst_15 : f32 to vector<8x128xf32>
    %22 = arith.maximumf %20, %21 : vector<8x128xf32>
    %23 = arith.truncf %22 : vector<8x128xf32> to vector<8x128xbf16>
    %c0_16 = arith.constant 0 : index
    %c0_17 = arith.constant 0 : index
    %24 = vector.load %arg8[%c0_16, %c0_17] : memref<128x128xbf16, #tpu.memory_space<vmem>>, vector<128x128xbf16>
    %cst_18 = arith.constant dense<0.000000e+00> : vector<8x128xf32>
    %25 = tpu.matmul %23, %24, %cst_18 {dimension_numbers = #tpu.dot_dimension_numbers<[1], [0], [0], [1], [0, 0, 1, 1], [], []>} : vector<8x128xbf16>, vector<128x128xbf16>, vector<8x128xf32> -> vector<8x128xf32>
    %c0_19 = arith.constant 0 : index
    %c0_20 = arith.constant 0 : index
    %26 = vector.load %arg9[%c0_19, %c0_20] : memref<1x128xf32, #tpu.memory_space<vmem>>, vector<1x128xf32>
    %27 = vector.broadcast %26 : vector<1x128xf32> to vector<8x128xf32>
    %28 = arith.addf %25, %27 : vector<8x128xf32>
    %cst_21 = arith.constant 0.000000e+00 : f32
    %29 = vector.broadcast %cst_21 : f32 to vector<8x128xf32>
    %30 = arith.maximumf %28, %29 : vector<8x128xf32>
    %c0_22 = arith.constant 0 : index
    %c0_23 = arith.constant 0 : index
    %31 = vector.load %arg10[%c0_22, %c0_23] : memref<8x128xf32, #tpu.memory_space<vmem>>, vector<8x128xf32>
    tpu.vector_store %arg10[%c0_22, %c0_23], %30 {strides = array<i32>} : memref<8x128xf32, #tpu.memory_space<vmem>>, vector<8x128xf32>,
    return
  }
  func.func @transform_0(%arg0: i32) -> (i32, i32) {
    %c0_i32 = arith.constant 0 : i32
    %c0_i32_0 = arith.constant 0 : i32
    return %arg0, %c0_i32 : i32, i32
  }
  func.func @transform_1(%arg0: i32) -> (i32, i32) {
    %c0_i32 = arith.constant 0 : i32
    %c0_i32_0 = arith.constant 0 : i32
    %c0_i32_1 = arith.constant 0 : i32
    return %c0_i32, %c0_i32_0 : i32, i32
  }
  func.func @transform_2(%arg0: i32) -> (i32, i32) {
    %c0_i32 = arith.constant 0 : i32
    %c0_i32_0 = arith.constant 0 : i32
    %c0_i32_1 = arith.constant 0 : i32
    return %c0_i32, %c0_i32_0 : i32, i32
  }
  func.func @transform_3(%arg0: i32) -> (i32, i32) {
    %c0_i32 = arith.constant 0 : i32
    %c0_i32_0 = arith.constant 0 : i32
    %c0_i32_1 = arith.constant 0 : i32
    return %c0_i32, %c0_i32_0 : i32, i32
  }
  func.func @transform_4(%arg0: i32) -> (i32, i32) {
    %c0_i32 = arith.constant 0 : i32
    %c0_i32_0 = arith.constant 0 : i32
    %c0_i32_1 = arith.constant 0 : i32
    return %c0_i32, %c0_i32_0 : i32, i32
  }
  func.func @transform_5(%arg0: i32) -> (i32, i32) {
    %c0_i32 = arith.constant 0 : i32
    %c0_i32_0 = arith.constant 0 : i32
    %c0_i32_1 = arith.constant 0 : i32
    return %c0_i32, %c0_i32_0 : i32, i32
  }
  func.func @transform_6(%arg0: i32) -> (i32, i32) {
    %c0_i32 = arith.constant 0 : i32
    %c0_i32_0 = arith.constant 0 : i32
    %c0_i32_1 = arith.constant 0 : i32
    return %c0_i32, %c0_i32_0 : i32, i32
  }
  func.func @transform_7(%arg0: i32) -> (i32, i32) {
    %c0_i32 = arith.constant 0 : i32
    %c0_i32_0 = arith.constant 0 : i32
    %c0_i32_1 = arith.constant 0 : i32
    return %c0_i32, %c0_i32_0 : i32, i32
  }
  func.func @transform_8(%arg0: i32) -> (i32, i32) {
    %c0_i32 = arith.constant 0 : i32
    %c0_i32_0 = arith.constant 0 : i32
    %c0_i32_1 = arith.constant 0 : i32
    return %c0_i32, %c0_i32_0 : i32, i32
  }
  func.func @transform_9(%arg0: i32) -> (i32, i32) {
    %c0_i32 = arith.constant 0 : i32
    %c0_i32_0 = arith.constant 0 : i32
    return %arg0, %c0_i32 : i32, i32
  }
}

</mosaic_0001>

<llo_original>
// kernel: classifier_forward_plain.1
$region0: #{classifier_forward_plain.1}
  #allocation0 [shape = 'u32[]', space=smem, size = 0x4, offset = 0x4, fixed_abs, tag = 'smem constant byte address 0x4 - core index']
  #allocation1 [shape = 'u32[144,128]{1,0:T(1,128)}', space=vmem, size = 0x12000, scoped, tag = 'internal scratch']
  %s0 = inlined_call_operand.vmem [shape: f32[8,128], index: 0, kind: input, shape index: {}]
  %s1 = inlined_call_operand.vmem [shape: f32[1,128], index: 1, kind: input, shape index: {}]
  %s2 = inlined_call_operand.vmem [shape: f32[1,128], index: 2, kind: input, shape index: {}]
  %s3 = inlined_call_operand.vmem [shape: bf16[128,256], index: 3, kind: input, shape index: {}]
  %s4 = inlined_call_operand.vmem [shape: f32[1,256], index: 4, kind: input, shape index: {}]
  %s5 = inlined_call_operand.vmem [shape: bf16[256,128], index: 5, kind: input, shape index: {}]
  %s6 = inlined_call_operand.vmem [shape: f32[1,128], index: 6, kind: input, shape index: {}]
  %s7 = inlined_call_operand.vmem [shape: bf16[128,128], index: 7, kind: input, shape index: {}]
  %s8 = inlined_call_operand.vmem [shape: f32[1,128], index: 8, kind: input, shape index: {}]
  %s9 = inlined_call_operand.hbm [shape: f32[8,128], index: 9, kind: output, shape index: {}]
  %s10 = sld [smem:[#allocation0]]
  $region46: #{classifier_forward_plain.1} parent=0
    _
  %s12 = ssub.s32 1, %s10
  %s13 = scalar_select 0, %s12, %s10
  $region1: #{classifier_forward_plain.1} parent=0
    #allocation2 [shape = 'u8[4096]{0}', space=vmem, size = 0x1000, scoped, tag = 'output window, operand 0, single buffered']
    #allocation3 [shape = 's32[1]{0}', space=sflag, size = 0x4, scoped, tag = 'scoped memory for classifier_forward_plain.1']
    %14 = vsyncpa [#allocation3], 0
    // Predicated region
    $region2: #{classifier_forward_plain.1} parent=1 // pred_check
      _
    $region3: #{classifier_forward_plain.1} parent=1 // pred_check_branch
      %16 = sbr.rel (0) target = $region5
    $region4: #{classifier_forward_plain.1} parent=1 // pred_region
      _
    $region5: #{classifier_forward_plain.1} parent=1 // pred_fallthru
      _
    // Predicated region
    $region6: #{classifier_forward_plain.1} parent=1 // pred_check
      _
    $region7: #{classifier_forward_plain.1} parent=1 // pred_check_branch
      %18 = sbr.rel (0) target = $region9
    $region8: #{classifier_forward_plain.1} parent=1 // pred_region
      _
    $region9: #{classifier_forward_plain.1} parent=1 // pred_fallthru
      _
    // Predicated region
    $region10: #{classifier_forward_plain.1} parent=1 // pred_check
      _
    $region11: #{classifier_forward_plain.1} parent=1 // pred_check_branch
      %20 = sbr.rel (0) target = $region13
    $region12: #{classifier_forward_plain.1} parent=1 // pred_region
      _
    $region13: #{classifier_forward_plain.1} parent=1 // pred_fallthru
      _
    // Predicated region
    $region14: #{classifier_forward_plain.1} parent=1 // pred_check
      _
    $region15: #{classifier_forward_plain.1} parent=1 // pred_check_branch
      %22 = sbr.rel (0) target = $region17
    $region16: #{classifier_forward_plain.1} parent=1 // pred_region
      _
    $region17: #{classifier_forward_plain.1} parent=1 // pred_fallthru
      _
    // Predicated region
    $region18: #{classifier_forward_plain.1} parent=1 // pred_check
      _
    $region19: #{classifier_forward_plain.1} parent=1 // pred_check_branch
      %24 = sbr.rel (0) target = $region21
    $region20: #{classifier_forward_plain.1} parent=1 // pred_region
      _
    $region21: #{classifier_forward_plain.1} parent=1 // pred_fallthru
      _
    // Predicated region
    $region22: #{classifier_forward_plain.1} parent=1 // pred_check
      _
    $region23: #{classifier_forward_plain.1} parent=1 // pred_check_branch
      %26 = sbr.rel (0) target = $region25
    $region24: #{classifier_forward_plain.1} parent=1 // pred_region
      _
    $region25: #{classifier_forward_plain.1} parent=1 // pred_fallthru
      _
    // Predicated region
    $region26: #{classifier_forward_plain.1} parent=1 // pred_check
      _
    $region27: #{classifier_forward_plain.1} parent=1 // pred_check_branch
      %28 = sbr.rel (0) target = $region29
    $region28: #{classifier_forward_plain.1} parent=1 // pred_region
      _
    $region29: #{classifier_forward_plain.1} parent=1 // pred_fallthru
      _
    // Predicated region
    $region30: #{classifier_forward_plain.1} parent=1 // pred_check
      _
    $region31: #{classifier_forward_plain.1} parent=1 // pred_check_branch
      %30 = sbr.rel (0) target = $region33
    $region32: #{classifier_forward_plain.1} parent=1 // pred_region
      _
    $region33: #{classifier_forward_plain.1} parent=1 // pred_fallthru
      _
    // Predicated region
    $region34: #{classifier_forward_plain.1} parent=1 // pred_check
      _
    $region35: #{classifier_forward_plain.1} parent=1 // pred_check_branch
      %32 = sbr.rel (0) target = $region37
    $region36: #{classifier_forward_plain.1} parent=1 // pred_region
      _
    $region37: #{classifier_forward_plain.1} parent=1 // pred_fallthru
      _
    %v34 = vld [vmem:[%s0] sm:$0xff]
    %v35 = vld [vmem:[%s1] sm:$0x1]
    %v37 = vlaneseq
    %v38 = vshrl.u32 %v37, 7
    %v39 = vsub.s32 0, %v38
    %v40 = vrot.slane %v35, %v39
    %v42 = vsub.f32 %v34, %v40
    %v43 = vld [vmem:[%s2] sm:$0x1]
    %v45 = vlaneseq
    %v46 = vshrl.u32 %v45, 7
    %v47 = vsub.s32 0, %v46
    %v48 = vrot.slane %v43, %v47
    %v50 = vmul.f32 %v42, %v48
    %v51 = vpack.c.bf16 %v50, %v50
    %v52 = vld [vmem:[%s3] sm:$0xff]
    %v53 = vld [vmem:[%s3 + $0x8] sm:$0xff]
    %v54 = vld [vmem:[%s3 + $0x10] sm:$0xff]
    %v55 = vld [vmem:[%s3 + $0x18] sm:$0xff]
    %v56 = vld [vmem:[%s3 + $0x20] sm:$0xff]
    %v57 = vld [vmem:[%s3 + $0x28] sm:$0xff]
    %v58 = vld [vmem:[%s3 + $0x30] sm:$0xff]
    %v59 = vld [vmem:[%s3 + $0x38] sm:$0xff]
    %v60 = vld [vmem:[%s3 + $0x40] sm:$0xff]
    %v61 = vld [vmem:[%s3 + $0x48] sm:$0xff]
    %v62 = vld [vmem:[%s3 + $0x50] sm:$0xff]
    %v63 = vld [vmem:[%s3 + $0x58] sm:$0xff]
    %v64 = vld [vmem:[%s3 + $0x60] sm:$0xff]
    %v65 = vld [vmem:[%s3 + $0x68] sm:$0xff]
    %v66 = vld [vmem:[%s3 + $0x70] sm:$0xff]
    %v67 = vld [vmem:[%s3 + $0x78] sm:$0xff]
    %v68 = vld [vmem:[%s4] sm:$0x3]
    %v70 = vlaneseq
    %v71 = vshrl.u32 %v70, 7
    %v72 = vsub.s32 0, %v71
    %v73 = vrot.slane %v68, %v72
    %v74 = vlaneseq
    %v75 = vshrl.u32 %v74, 7
    %v76 = vsub.s32 1, %v75
    %v77 = vrot.slane %v68, %v76
    %v96 = vunpack.c.l.b16 %v52
    %v97 = vunpack.c.h.b16 %v52
    %v98 = vunpack.c.l.b16 %v53
    %v99 = vunpack.c.h.b16 %v53
    %v100 = vunpack.c.l.b16 %v54
    %v101 = vunpack.c.h.b16 %v54
    %v102 = vunpack.c.l.b16 %v55
    %v103 = vunpack.c.h.b16 %v55
    %v104 = vunpack.c.l.b16 %v56
    %v105 = vunpack.c.h.b16 %v56
    %v106 = vunpack.c.l.b16 %v57
    %v107 = vunpack.c.h.b16 %v57
    %v108 = vunpack.c.l.b16 %v58
    %v109 = vunpack.c.h.b16 %v58
    %v110 = vunpack.c.l.b16 %v59
    %v111 = vunpack.c.h.b16 %v59
    %v112 = vunpack.c.l.b16 %v60
    %v113 = vunpack.c.h.b16 %v60
    %v114 = vunpack.c.l.b16 %v61
    %v115 = vunpack.c.h.b16 %v61
    %v116 = vunpack.c.l.b16 %v62
    %v117 = vunpack.c.h.b16 %v62
    %v118 = vunpack.c.l.b16 %v63
    %v119 = vunpack.c.h.b16 %v63
    %v120 = vunpack.c.l.b16 %v64
    %v121 = vunpack.c.h.b16 %v64
    %v122 = vunpack.c.l.b16 %v65
    %v123 = vunpack.c.h.b16 %v65
    %v124 = vunpack.c.l.b16 %v66
    %v125 = vunpack.c.h.b16 %v66
    %v126 = vunpack.c.l.b16 %v67
    %v127 = vunpack.c.h.b16 %v67
    %v128 = vpack.c.b16 %v98, %v96
    %v129 = vpack.c.b16 %v99, %v97
    %v130 = vpack.c.b16 %v102, %v100
    %v131 = vpack.c.b16 %v103, %v101
    %v132 = vpack.c.b16 %v106, %v104
    %v133 = vpack.c.b16 %v107, %v105
    %v134 = vpack.c.b16 %v110, %v108
    %v135 = vpack.c.b16 %v111, %v109
    %v136 = vpack.c.b16 %v114, %v112
    %v137 = vpack.c.b16 %v115, %v113
    %v138 = vpack.c.b16 %v118, %v116
    %v139 = vpack.c.b16 %v119, %v117
    %v140 = vpack.c.b16 %v122, %v120
    %v141 = vpack.c.b16 %v123, %v121
    %v142 = vpack.c.b16 %v126, %v124
    %v143 = vpack.c.b16 %v127, %v125
    %160 = vmatprep.subr.bf16.mxu0 %v129
    %161 = vmatpush1.bf16.msra.mxu0 %v128
    %162 = vmatprep.subr.bf16.mxu0 %v131
    %163 = vmatpush1.bf16.msra.mxu0 %v130
    %164 = vmatprep.subr.bf16.mxu0 %v133
    %165 = vmatpush1.bf16.msra.mxu0 %v132
    %166 = vmatprep.subr.bf16.mxu0 %v135
    %167 = vmatpush1.bf16.msra.mxu0 %v134
    %168 = vmatprep.subr.bf16.mxu0 %v137
    %169 = vmatpush1.bf16.msra.mxu0 %v136
    %170 = vmatprep.subr.bf16.mxu0 %v139
    %171 = vmatpush1.bf16.msra.mxu0 %v138
    %172 = vmatprep.subr.bf16.mxu0 %v141
    %173 = vmatpush1.bf16.msra.mxu0 %v140
    %174 = vmatprep.subr.bf16.mxu0 %v143
    %175 = vmatpush1.bf16.msra.mxu0 %v142
    %176 = vmatprep.subr.bf16.mxu0 0
    %177 = vmatpush1.bf16.msra.mxu0 0
    %178 = vmatprep.subr.bf16.mxu0 0
    %179 = vmatpush1.bf16.msra.mxu0 0
    %180 = vmatprep.subr.bf16.mxu0 0
    %181 = vmatpush1.bf16.msra.mxu0 0
    %182 = vmatprep.subr.bf16.mxu0 0
    %183 = vmatpush1.bf16.msra.mxu0 0
    %184 = vmatprep.subr.bf16.mxu0 0
    %185 = vmatpush1.bf16.msra.mxu0 0
    %186 = vmatprep.subr.bf16.mxu0 0
    %187 = vmatpush1.bf16.msra.mxu0 0
    %188 = vmatprep.subr.bf16.mxu0 0
    %189 = vmatpush1.bf16.msra.mxu0 0
    %190 = vmatprep.subr.bf16.mxu0 0
    %191 = vmatpush1.bf16.msra.mxu0 0
    %192 = vmatprep.mubr.bf16.mxu0 0
    %193 = vmatmul.mubr.bf16.gmra.mrb[0].mxu0 %v51
    %v194 = vpop.f32.mrb[0].mxu0
    %v195 = vadd.f32 %v73, %v194
    %v196 = vpop.f32.mrb[0].mxu0
    %v197 = vadd.f32 %v77, %v196
    %v198 = vpop.f32.mrb[0].mxu0
    %v199 = vpop.f32.mrb[0].mxu0
    %200 = vdwg.mxu0
    %v201 = vmax.f32 %v195, 0.0
    %v202 = vmax.f32 %v197, 0.0
    %v203 = vpack.c.bf16 %v201, %v201
    %v204 = vpack.c.bf16 %v202, %v202
    %v205 = vld [vmem:[%s5] sm:$0xf]
    %v206 = vld [vmem:[%s5 + $0x4] sm:$0xf]
    %v207 = vld [vmem:[%s5 + $0x8] sm:$0xf]
    %v208 = vld [vmem:[%s5 + $0xc] sm:$0xf]
    %v209 = vld [vmem:[%s5 + $0x10] sm:$0xf]
    %v210 = vld [vmem:[%s5 + $0x14] sm:$0xf]
    %v211 = vld [vmem:[%s5 + $0x18] sm:$0xf]
    %v212 = vld [vmem:[%s5 + $0x1c] sm:$0xf]
    %v213 = vld [vmem:[%s5 + $0x20] sm:$0xf]
    %v214 = vld [vmem:[%s5 + $0x24] sm:$0xf]
    %v215 = vld [vmem:[%s5 + $0x28] sm:$0xf]
    %v216 = vld [vmem:[%s5 + $0x2c] sm:$0xf]
    %v217 = vld [vmem:[%s5 + $0x30] sm:$0xf]
    %v218 = vld [vmem:[%s5 + $0x34] sm:$0xf]
    %v219 = vld [vmem:[%s5 + $0x38] sm:$0xf]
    %v220 = vld [vmem:[%s5 + $0x3c] sm:$0xf]
    %v221 = vld [vmem:[%s5 + $0x40] sm:$0xf]
    %v222 = vld [vmem:[%s5 + $0x44] sm:$0xf]
    %v223 = vld [vmem:[%s5 + $0x48] sm:$0xf]
    %v224 = vld [vmem:[%s5 + $0x4c] sm:$0xf]
    %v225 = vld [vmem:[%s5 + $0x50] sm:$0xf]
    %v226 = vld [vmem:[%s5 + $0x54] sm:$0xf]
    %v227 = vld [vmem:[%s5 + $0x58] sm:$0xf]
    %v228 = vld [vmem:[%s5 + $0x5c] sm:$0xf]
    %v229 = vld [vmem:[%s5 + $0x60] sm:$0xf]
    %v230 = vld [vmem:[%s5 + $0x64] sm:$0xf]
    %v231 = vld [vmem:[%s5 + $0x68] sm:$0xf]
    %v232 = vld [vmem:[%s5 + $0x6c] sm:$0xf]
    %v233 = vld [vmem:[%s5 + $0x70] sm:$0xf]
    %v234 = vld [vmem:[%s5 + $0x74] sm:$0xf]
    %v235 = vld [vmem:[%s5 + $0x78] sm:$0xf]
    %v236 = vld [vmem:[%s5 + $0x7c] sm:$0xf]
    %v237 = vld [vmem:[%s6] sm:$0x1]
    %v239 = vlaneseq
    %v240 = vshrl.u32 %v239, 7
    %v241 = vsub.s32 0, %v240
    %v242 = vrot.slane %v237, %v241
    %v276 = vunpack.c.l.b16 %v205
    %v277 = vunpack.c.l.b16 %v206
    %v278 = vunpack.c.l.b16 %v207
    %v279 = vunpack.c.l.b16 %v208
    %v280 = vunpack.c.l.b16 %v209
    %v281 = vunpack.c.l.b16 %v210
    %v282 = vunpack.c.l.b16 %v211
    %v283 = vunpack.c.l.b16 %v212
    %v284 = vunpack.c.l.b16 %v213
    %v285 = vunpack.c.l.b16 %v214
    %v286 = vunpack.c.l.b16 %v215
    %v287 = vunpack.c.l.b16 %v216
    %v288 = vunpack.c.l.b16 %v217
    %v289 = vunpack.c.l.b16 %v218
    %v290 = vunpack.c.l.b16 %v219
    %v291 = vunpack.c.l.b16 %v220
    %v292 = vunpack.c.l.b16 %v221
    %v293 = vunpack.c.l.b16 %v222
    %v294 = vunpack.c.l.b16 %v223
    %v295 = vunpack.c.l.b16 %v224
    %v296 = vunpack.c.l.b16 %v225
    %v297 = vunpack.c.l.b16 %v226
    %v298 = vunpack.c.l.b16 %v227
    %v299 = vunpack.c.l.b16 %v228
    %v300 = vunpack.c.l.b16 %v229
    %v301 = vunpack.c.l.b16 %v230
    %v302 = vunpack.c.l.b16 %v231
    %v303 = vunpack.c.l.b16 %v232
    %v304 = vunpack.c.l.b16 %v233
    %v305 = vunpack.c.l.b16 %v234
    %v306 = vunpack.c.l.b16 %v235
    %v307 = vunpack.c.l.b16 %v236
    %v308 = vpack.c.b16 %v277, %v276
    %v309 = vpack.c.b16 %v279, %v278
    %v310 = vpack.c.b16 %v281, %v280
    %v311 = vpack.c.b16 %v283, %v282
    %v312 = vpack.c.b16 %v285, %v284
    %v313 = vpack.c.b16 %v287, %v286
    %v314 = vpack.c.b16 %v289, %v288
    %v315 = vpack.c.b16 %v291, %v290
    %v316 = vpack.c.b16 %v293, %v292
    %v317 = vpack.c.b16 %v295, %v294
    %v318 = vpack.c.b16 %v297, %v296
    %v319 = vpack.c.b16 %v299, %v298
    %v320 = vpack.c.b16 %v301, %v300
    %v321 = vpack.c.b16 %v303, %v302
    %v322 = vpack.c.b16 %v305, %v304
    %v323 = vpack.c.b16 %v307, %v306
    %340 = vmatprep.subr.bf16.mxu0 0
    %341 = vmatpush1.bf16.msra.mxu0 %v308
    %342 = vmatprep.subr.bf16.mxu0 0
    %343 = vmatpush1.bf16.msra.mxu0 %v309
    %344 = vmatprep.subr.bf16.mxu0 0
    %345 = vmatpush1.bf16.msra.mxu0 %v310
    %346 = vmatprep.subr.bf16.mxu0 0
    %347 = vmatpush1.bf16.msra.mxu0 %v311
    %348 = vmatprep.subr.bf16.mxu0 0
    %349 = vmatpush1.bf16.msra.mxu0 %v312
    %350 = vmatprep.subr.bf16.mxu0 0
    %351 = vmatpush1.bf16.msra.mxu0 %v313
    %352 = vmatprep.subr.bf16.mxu0 0
    %353 = vmatpush1.bf16.msra.mxu0 %v314
    %354 = vmatprep.subr.bf16.mxu0 0
    %355 = vmatpush1.bf16.msra.mxu0 %v315
    %356 = vmatprep.subr.bf16.mxu0 0
    %357 = vmatpush1.bf16.msra.mxu0 %v316
    %358 = vmatprep.subr.bf16.mxu0 0
    %359 = vmatpush1.bf16.msra.mxu0 %v317
    %360 = vmatprep.subr.bf16.mxu0 0
    %361 = vmatpush1.bf16.msra.mxu0 %v318
    %362 = vmatprep.subr.bf16.mxu0 0
    %363 = vmatpush1.bf16.msra.mxu0 %v319
    %364 = vmatprep.subr.bf16.mxu0 0
    %365 = vmatpush1.bf16.msra.mxu0 %v320
    %366 = vmatprep.subr.bf16.mxu0 0
    %367 = vmatpush1.bf16.msra.mxu0 %v321
    %368 = vmatprep.subr.bf16.mxu0 0
    %369 = vmatpush1.bf16.msra.mxu0 %v322
    %370 = vmatprep.subr.bf16.mxu0 0
    %371 = vmatpush1.bf16.msra.mxu0 %v323
    %372 = vmatprep.mubr.bf16.mxu0 %v204
    %373 = vmatmul.mubr.bf16.gmra.mrb[0].mxu0 %v203
    %v374 = vpop.f32.mrb[0].mxu0
    %v375 = vadd.f32 %v242, %v374
    %v376 = vpop.f32.mrb[0].mxu0
    %v377 = vpop.f32.mrb[0].mxu0
    %v378 = vpop.f32.mrb[0].mxu0
    %379 = vdwg.mxu0
    %v380 = vmax.f32 %v375, 0.0
    %v381 = vpack.c.bf16 %v380, %v380
    %v382 = vld [vmem:[%s7] sm:$0xf]
    %v383 = vld [vmem:[%s7 + $0x4] sm:$0xf]
    %v384 = vld [vmem:[%s7 + $0x8] sm:$0xf]
    %v385 = vld [vmem:[%s7 + $0xc] sm:$0xf]
    %v386 = vld [vmem:[%s7 + $0x10] sm:$0xf]
    %v387 = vld [vmem:[%s7 + $0x14] sm:$0xf]
    %v388 = vld [vmem:[%s7 + $0x18] sm:$0xf]
    %v389 = vld [vmem:[%s7 + $0x1c] sm:$0xf]
    %v390 = vld [vmem:[%s7 + $0x20] sm:$0xf]
    %v391 = vld [vmem:[%s7 + $0x24] sm:$0xf]
    %v392 = vld [vmem:[%s7 + $0x28] sm:$0xf]
    %v393 = vld [vmem:[%s7 + $0x2c] sm:$0xf]
    %v394 = vld [vmem:[%s7 + $0x30] sm:$0xf]
    %v395 = vld [vmem:[%s7 + $0x34] sm:$0xf]
    %v396 = vld [vmem:[%s7 + $0x38] sm:$0xf]
    %v397 = vld [vmem:[%s7 + $0x3c] sm:$0xf]
    %v398 = vld [vmem:[%s8] sm:$0x1]
    %v400 = vlaneseq
    %v401 = vshrl.u32 %v400, 7
    %v402 = vsub.s32 0, %v401
    %v403 = vrot.slane %v398, %v402
    %v421 = vunpack.c.l.b16 %v382
    %v422 = vunpack.c.l.b16 %v383
    %v423 = vunpack.c.l.b16 %v384
    %v424 = vunpack.c.l.b16 %v385
    %v425 = vunpack.c.l.b16 %v386
    %v426 = vunpack.c.l.b16 %v387
    %v427 = vunpack.c.l.b16 %v388
    %v428 = vunpack.c.l.b16 %v389
    %v429 = vunpack.c.l.b16 %v390
    %v430 = vunpack.c.l.b16 %v391
    %v431 = vunpack.c.l.b16 %v392
    %v432 = vunpack.c.l.b16 %v393
    %v433 = vunpack.c.l.b16 %v394
    %v434 = vunpack.c.l.b16 %v395
    %v435 = vunpack.c.l.b16 %v396
    %v436 = vunpack.c.l.b16 %v397
    %v437 = vpack.c.b16 %v422, %v421
    %v438 = vpack.c.b16 %v424, %v423
    %v439 = vpack.c.b16 %v426, %v425
    %v440 = vpack.c.b16 %v428, %v427
    %v441 = vpack.c.b16 %v430, %v429
    %v442 = vpack.c.b16 %v432, %v431
    %v443 = vpack.c.b16 %v434, %v433
    %v444 = vpack.c.b16 %v436, %v435
    %453 = vmatprep.subr.bf16.mxu0 0
    %454 = vmatpush1.bf16.msra.mxu0 %v437
    %455 = vmatprep.subr.bf16.mxu0 0
    %456 = vmatpush1.bf16.msra.mxu0 %v438
    %457 = vmatprep.subr.bf16.mxu0 0
    %458 = vmatpush1.bf16.msra.mxu0 %v439
    %459 = vmatprep.subr.bf16.mxu0 0
    %460 = vmatpush1.bf16.msra.mxu0 %v440
    %461 = vmatprep.subr.bf16.mxu0 0
    %462 = vmatpush1.bf16.msra.mxu0 %v441
    %463 = vmatprep.subr.bf16.mxu0 0
    %464 = vmatpush1.bf16.msra.mxu0 %v442
    %465 = vmatprep.subr.bf16.mxu0 0
    %466 = vmatpush1.bf16.msra.mxu0 %v443
    %467 = vmatprep.subr.bf16.mxu0 0
    %468 = vmatpush1.bf16.msra.mxu0 %v444
    %469 = vmatprep.subr.bf16.mxu0 0
    %470 = vmatpush1.bf16.msra.mxu0 0
    %471 = vmatprep.subr.bf16.mxu0 0
    %472 = vmatpush1.bf16.msra.mxu0 0
    %473 = vmatprep.subr.bf16.mxu0 0
    %474 = vmatpush1.bf16.msra.mxu0 0
    %475 = vmatprep.subr.bf16.mxu0 0
    %476 = vmatpush1.bf16.msra.mxu0 0
    %477 = vmatprep.subr.bf16.mxu0 0
    %478 = vmatpush1.bf16.msra.mxu0 0
    %479 = vmatprep.subr.bf16.mxu0 0
    %480 = vmatpush1.bf16.msra.mxu0 0
    %481 = vmatprep.subr.bf16.mxu0 0
    %482 = vmatpush1.bf16.msra.mxu0 0
    %483 = vmatprep.subr.bf16.mxu0 0
    %484 = vmatpush1.bf16.msra.mxu0 0
    %485 = vmatprep.mubr.bf16.mxu0 0
    %486 = vmatmul.mubr.bf16.gmra.mrb[0].mxu0 %v381
    %v487 = vpop.f32.mrb[0].mxu0
    %v488 = vadd.f32 %v403, %v487
    %v489 = vpop.f32.mrb[0].mxu0
    %v490 = vpop.f32.mrb[0].mxu0
    %v491 = vpop.f32.mrb[0].mxu0
    %492 = vdwg.mxu0
    %v493 = vmax.f32 %v488, 0.0
    %494 = vst [vmem:[#allocation2] sm:$0xff] %v493
    // Predicated region
    $region38: #{classifier_forward_plain.1} parent=1 // pred_check
      _
    $region39: #{classifier_forward_plain.1} parent=1 // pred_check_branch
      %496 = sbr.rel (0) target = $region41
    $region40: #{classifier_forward_plain.1} parent=1 // pred_region
      %s498 = ssub.s32 128, 128
      %499 = vsyncadd [#allocation3], %s498
      %s501 = sshll.u32 [#allocation2], 4
      %s502 = int_to_ptr.vmem [resolvable:$true] %s501
      %504 = dma.vmem_to_hbm [thread:$0]  %s502, 128, %s9, [#allocation3]
    $region41: #{classifier_forward_plain.1} parent=1 // pred_fallthru
      _
    // Predicated region
    $region42: #{classifier_forward_plain.1} parent=1 // pred_check
      _
    $region43: #{classifier_forward_plain.1} parent=1 // pred_check_branch
      %506 = sbr.rel (0) target = $region45
    $region44: #{classifier_forward_plain.1} parent=1 // pred_region
      %507 = dma.done [#allocation3], 128
    $region45: #{classifier_forward_plain.1} parent=1 // pred_fallthru
      _
    %508 = vsyncpa [#allocation3], 1

</llo_original>
